<compile_context>
chip_gen: v5e
topology: v5e:2x2
jax: 0.10.0
libtpu: 0.0.40
codegen_flags: <defaults>
</compile_context>

<pallas_src>
import functools

import jax
import jax.numpy as jnp
from jax.experimental import pallas as pl
from jax.experimental.pallas import tpu as pltpu

EPS = 1e-8
_LANE = 128
_SUBLANE = 8
_LANE_TILE_CAP = 2048          # max lane (HW) tile width


def _vmem_capacity_bytes():
    try:
        info = pltpu.get_tpu_info()
        for attr in ("vmem_capacity_bytes", "vmem_bytes", "vmem_size_bytes"):
            v = getattr(info, attr, None)
            if v:
                return int(v)
    except Exception:
        pass
    return None


def _tpu_config():
    cap = _vmem_capacity_bytes()
    if cap is not None and cap >= 96 * (1 << 20):
        # v5e / v6e: 128 MiB physical VMEM -> big tiles, raised scoped limit.
        return dict(vmem_limit=80 << 20, tile_bytes=8 << 20, input_buffers=2)
    if cap is not None:
        # v7x: 64 MiB VMEM per TensorCore -> smaller tiles, <=~44 MiB limit,
        # 3-deep input pipeline to hide DMA issue latency at 3.2 TB/s.
        return dict(vmem_limit=44 << 20, tile_bytes=4 << 20, input_buffers=3)
    # Unknown chip: conservative (fits every generation).
    return dict(vmem_limit=44 << 20, tile_bytes=4 << 20, input_buffers=2)


def _round_down(x, m):
    return (x // m) * m


def _choose_tiles(nc, hw, tile_bytes):
    """Pick (block_rows, tile_hw) that are legal (mult-of-8/128 or full-extent),
    lane-dense where possible, and ~tile_bytes big."""
    # ---- lane (HW) tile ----
    if hw <= _LANE_TILE_CAP:
        tile_hw = hw                       # full extent: always legal
    else:
        cap = _round_down(_LANE_TILE_CAP, _LANE)
        tile_hw = 0
        d = cap
        while d >= _LANE:                  # prefer an exact mult-of-128 divisor
            if hw % d == 0:
                tile_hw = d
                break
            d -= _LANE
        if tile_hw == 0:
            tile_hw = cap                  # ragged tail -> masked in stats pass
    # ---- row tile under the byte budget ----
    max_rows = max(1, tile_bytes // (tile_hw * 4))
    if nc <= max_rows:
        block_rows = nc                    # full extent: always legal
    else:
        block_rows = max(_SUBLANE, _round_down(max_rows, _SUBLANE))
    return block_rows, tile_hw


def _make_input_spec(block_shape, index_map, n_buffers):
    if n_buffers > 2:
        try:
            return pl.BlockSpec(block_shape, index_map,
                                pipeline_mode=pl.Buffered(n_buffers))
        except Exception:
            pass
    return pl.BlockSpec(block_shape, index_map)


# ---------------- pass 1: per-row sum / sum-of-squares ----------------
def _stats_kernel(x_ref, sum_ref, sq_ref, acc_s, acc_q, *,
                  tile_hw, hw, block_rows):
    lane_groups = tile_hw // _LANE if tile_hw % _LANE == 0 else 0

    if lane_groups == 0:
        # tile_hw == full HW and not 128-aligned => single hj step: direct reduce.
        x = x_ref[...].astype(jnp.float32)
        sum_ref[...] = jnp.sum(x, axis=1, keepdims=True)
        sq_ref[...] = jnp.sum(x * x, axis=1, keepdims=True)
        return

    hj = pl.program_id(1)

    @pl.when(hj == 0)
    def _():
        acc_s[...] = jnp.zeros_like(acc_s)
        acc_q[...] = jnp.zeros_like(acc_q)

    need_mask = (hw % tile_hw) != 0
    if need_mask:
        lane_iota = jax.lax.broadcasted_iota(jnp.int32, (block_rows, _LANE), 1)
        base = hj * tile_hw

    # Lane-dense, pure-VALU accumulation over the 128-wide lane groups.
    s = jnp.zeros((block_rows, _LANE), jnp.float32)
    q = jnp.zeros((block_rows, _LANE), jnp.float32)
    for j in range(lane_groups):
        c = x_ref[:, j * _LANE:(j + 1) * _LANE].astype(jnp.float32)
        if need_mask:
            c = jnp.where(base + (j * _LANE) + lane_iota < hw, c, 0.0)
        s = s + c
        q = q + c * c
    acc_s[...] += s
    acc_q[...] += q

    # Single cross-lane (XLU) reduce + narrow store, once per row tile.
    @pl.when(hj == pl.num_programs(1) - 1)
    def _():
        sum_ref[...] = jnp.sum(acc_s[...], axis=1, keepdims=True)
        sq_ref[...] = jnp.sum(acc_q[...], axis=1, keepdims=True)


# ---------------- pass 2: fused per-row multiply-add ----------------
def _norm_kernel(x_ref, a_ref, b_ref, o_ref):
    x = x_ref[...].astype(jnp.float32)                 # (block_rows, tile_hw)
    o_ref[...] = (x * a_ref[...] + b_ref[...]).astype(o_ref.dtype)


def _batch_norm_forward_impl(x_nchw, scale, shift):
    """Training-mode forward of BatchNormalization.

    Args:
      x_nchw: (N, C, H, W) float32
      scale:  (1, C, 1, 1) float32
      shift:  (1, C, 1, 1) float32
    Returns:
      (x_rescaled (N,C,H,W), batch_mean (1,C,1,1), batch_std (1,C,1,1))
    """
    N, C, H, W = x_nchw.shape
    HW = H * W
    NC = N * C
    x2d = x_nchw.reshape(NC, HW)          # free view of contiguous NCHW

    cfg = _tpu_config()
    block_rows, tile_hw = _choose_tiles(NC, HW, cfg["tile_bytes"])
    grid = (pl.cdiv(NC, block_rows), pl.cdiv(HW, tile_hw))

    # ------------- pass 1: per-(n,c)-row partial moments -------------
    stats_kernel = functools.partial(
        _stats_kernel, tile_hw=tile_hw, hw=HW, block_rows=block_rows)

    sum_rows, sq_rows = pl.pallas_call(
        stats_kernel,
        out_shape=(jax.ShapeDtypeStruct((NC, 1), jnp.float32),
                   jax.ShapeDtypeStruct((NC, 1), jnp.float32)),
        grid_spec=pltpu.PrefetchScalarGridSpec(
            num_scalar_prefetch=0,
            grid=grid,
            in_specs=[_make_input_spec((block_rows, tile_hw),
                                       lambda ri, hj: (ri, hj),
                                       cfg["input_buffers"])],
            out_specs=[pl.BlockSpec((block_rows, 1), lambda ri, hj: (ri, 0)),
                       pl.BlockSpec((block_rows, 1), lambda ri, hj: (ri, 0))],
            scratch_shapes=[pltpu.VMEM((block_rows, _LANE), jnp.float32),
                            pltpu.VMEM((block_rows, _LANE), jnp.float32)],
        ),
        compiler_params=pltpu.CompilerParams(
            # row axis parallel (per-tile partial outputs -> safe on v7x
            # megacore); HW axis is the resident-accumulator reduction.
            dimension_semantics=("parallel", "arbitrary"),
            vmem_limit_bytes=cfg["vmem_limit"],
        ),
        cost_estimate=pl.CostEstimate(
            flops=3 * NC * HW, transcendentals=0,
            bytes_accessed=NC * HW * 4 + 2 * NC * 4),
    )(x2d)

    # ---- tiny host-side fold: (N*C,) row partials -> per-channel stats ----
    inv_count = 1.0 / float(N * HW)
    mean_c = jnp.sum(sum_rows.reshape(N, C), axis=0) * inv_count      # (C,)
    ex2_c = jnp.sum(sq_rows.reshape(N, C), axis=0) * inv_count        # (C,)
    var_c = jnp.maximum(ex2_c - mean_c * mean_c, 0.0)
    std_c = jnp.sqrt(var_c + EPS)

    # out = scale * (x - mean) / (std + eps) + shift  ==  x * a + b
    scale_c = scale.reshape(C).astype(jnp.float32)
    shift_c = shift.reshape(C).astype(jnp.float32)
    a_c = scale_c / (std_c + EPS)
    b_c = shift_c - mean_c * a_c
    a_rows = jnp.tile(a_c, N).reshape(NC, 1)   # per-row (n,c) coefficients
    b_rows = jnp.tile(b_c, N).reshape(NC, 1)

    # ------------- pass 2: normalize -------------
    out2d = pl.pallas_call(
        _norm_kernel,
        out_shape=jax.ShapeDtypeStruct((NC, HW), x_nchw.dtype),
        grid_spec=pltpu.PrefetchScalarGridSpec(
            num_scalar_prefetch=0,
            grid=grid,
            in_specs=[_make_input_spec((block_rows, tile_hw),
                                       lambda ri, hj: (ri, hj),
                                       cfg["input_buffers"]),
                      pl.BlockSpec((block_rows, 1), lambda ri, hj: (ri, 0)),
                      pl.BlockSpec((block_rows, 1), lambda ri, hj: (ri, 0))],
            out_specs=pl.BlockSpec((block_rows, tile_hw),
                                   lambda ri, hj: (ri, hj)),
        ),
        compiler_params=pltpu.CompilerParams(
            dimension_semantics=("parallel", "parallel"),
            vmem_limit_bytes=cfg["vmem_limit"],
        ),
        cost_estimate=pl.CostEstimate(
            flops=2 * NC * HW, transcendentals=0,
            bytes_accessed=2 * NC * HW * 4 + 2 * NC * 4),
    )(x2d, a_rows, b_rows)

    out = out2d.reshape(N, C, H, W)
    batch_mean = mean_c.reshape(1, C, 1, 1)
    batch_std = std_c.reshape(1, C, 1, 1)
    return out, batch_mean, batch_std


batch_norm_forward = jax.jit(_batch_norm_forward_impl)


class BatchNormalizationJax:
    """Thin stateful wrapper mirroring the PyTorch module (training mode)."""

    def __init__(self, num_features, beta=0.9):
        self.beta = beta
        # deterministic init matching the PyTorch __init__
        self.shift = jnp.zeros((1, num_features, 1, 1), jnp.float32)
        self.scale = 1e-8 + jnp.ones((1, num_features, 1, 1), jnp.float32)
        self.mean = None
        self.std = None

    def __call__(self, x):
        out, mean, std = batch_norm_forward(x, self.scale, self.shift)
        # running-stat EMA is host/JAX-side module state, not kernel work
        # (EMA of std, not var, and double-eps — matches the reference module)
        if self.mean is None:
            self.mean, self.std = mean, std
        else:
            self.mean = self.mean * self.beta + mean * (1 - self.beta)
            self.std = self.std * self.beta + std * (1 - self.beta)
        return out


def _reference(x, scale, shift):
    mean = jnp.mean(x, axis=(0, 2, 3), keepdims=True)
    var = jnp.mean((x - mean) ** 2, axis=(0, 2, 3), keepdims=True)
    std = jnp.sqrt(var + EPS)
    x_std = (x - mean) / (std + EPS)
    return scale * x_std + shift


if __name__ == "__main__":
    key = jax.random.PRNGKey(0)
    N, C, H, W = 2, 4, 16, 16
    x = jax.random.normal(key, (N, C, H, W), dtype=jnp.float32)

    bn = BatchNormalizationJax(num_features=C, beta=0.9)
    out = bn(x)
    out = jax.block_until_ready(out)

    ref = _reference(x, bn.scale, bn.shift)
    assert out.shape == (N, C, H, W)
    assert jnp.allclose(out, ref, atol=1e-5, rtol=1e-5), "mismatch vs reference"

    print("KERNEL_OK")
</pallas_src>

<mosaic_0001>
module attributes {stable_mosaic.version = 11 : i64} {
  func.func @_stats_kernel(%arg0: i32, %arg1: i32, %arg2: memref<8x256xf32, #tpu.memory_space<vmem>>, %arg3: memref<8x1xf32, #tpu.memory_space<vmem>>, %arg4: memref<8x1xf32, #tpu.memory_space<vmem>>, %arg5: memref<8x128xf32, #tpu.memory_space<vmem>>, %arg6: memref<8x128xf32, #tpu.memory_space<vmem>>) attributes {dimension_semantics = [#tpu.dimension_semantics<parallel>, #tpu.dimension_semantics<arbitrary>], iteration_bounds = array<i64: 1, 1>, scalar_prefetch = 0 : i64, scratch_operands = 2 : i64, tpu.core_type = #tpu.core_type<tc>, window_params = [{transform_indices = @transform_0, window_bounds = array<i64: 8, 256>}, {transform_indices = @transform_1, window_bounds = array<i64: 8, 1>}, {transform_indices = @transform_2, window_bounds = array<i64: 8, 1>}]} {
    %c0_i32 = arith.constant 0 : i32
    %0 = arith.cmpi eq, %arg1, %c0_i32 : i32
    %1 = arith.extui %0 : i1 to i32
    %c0_i32_0 = arith.constant 0 : i32
    %2 = arith.cmpi ne, %1, %c0_i32_0 : i32
    scf.if %2 {
      %cst_14 = arith.constant 0.000000e+00 : f32
      %22 = vector.broadcast %cst_14 : f32 to vector<8x128xf32>
      %c0_15 = arith.constant 0 : index
      %c0_16 = arith.constant 0 : index
      %23 = vector.load %arg5[%c0_15, %c0_16] : memref<8x128xf32, #tpu.memory_space<vmem>>, vector<8x128xf32>
      tpu.vector_store %arg5[%c0_15, %c0_16], %22 {strides = array<i32>} : memref<8x128xf32, #tpu.memory_space<vmem>>, vector<8x128xf32>,
      %cst_17 = arith.constant 0.000000e+00 : f32
      %24 = vector.broadcast %cst_17 : f32 to vector<8x128xf32>
      %c0_18 = arith.constant 0 : index
      %c0_19 = arith.constant 0 : index
      %25 = vector.load %arg6[%c0_18, %c0_19] : memref<8x128xf32, #tpu.memory_space<vmem>>, vector<8x128xf32>
      tpu.vector_store %arg6[%c0_18, %c0_19], %24 {strides = array<i32>} : memref<8x128xf32, #tpu.memory_space<vmem>>, vector<8x128xf32>,
    } else {
    }
    %cst = arith.constant 0.000000e+00 : f32
    %3 = vector.broadcast %cst : f32 to vector<8x128xf32>
    %cst_1 = arith.constant 0.000000e+00 : f32
    %4 = vector.broadcast %cst_1 : f32 to vector<8x128xf32>
    %c0 = arith.constant 0 : index
    %c0_2 = arith.constant 0 : index
    %5 = vector.load %arg2[%c0, %c0_2] : memref<8x256xf32, #tpu.memory_space<vmem>>, vector<8x128xf32>
    %6 = arith.addf %3, %5 : vector<8x128xf32>
    %7 = arith.mulf %5, %5 : vector<8x128xf32>
    %8 = arith.addf %4, %7 : vector<8x128xf32>
    %c0_3 = arith.constant 0 : index
    %c128 = arith.constant 128 : index
    %9 = vector.load %arg2[%c0_3, %c128] : memref<8x256xf32, #tpu.memory_space<vmem>>, vector<8x128xf32>
    %10 = arith.addf %6, %9 : vector<8x128xf32>
    %11 = arith.mulf %9, %9 : vector<8x128xf32>
    %12 = arith.addf %8, %11 : vector<8x128xf32>
    %c0_4 = arith.constant 0 : index
    %c0_5 = arith.constant 0 : index
    %13 = vector.load %arg5[%c0_4, %c0_5] : memref<8x128xf32, #tpu.memory_space<vmem>>, vector<8x128xf32>
    %14 = arith.addf %13, %10 : vector<8x128xf32>
    %c0_6 = arith.constant 0 : index
    %c0_7 = arith.constant 0 : index
    %15 = vector.load %arg5[%c0_6, %c0_7] : memref<8x128xf32, #tpu.memory_space<vmem>>, vector<8x128xf32>
    tpu.vector_store %arg5[%c0_6, %c0_7], %14 {strides = array<i32>} : memref<8x128xf32, #tpu.memory_space<vmem>>, vector<8x128xf32>,
    %c0_8 = arith.constant 0 : index
    %c0_9 = arith.constant 0 : index
    %16 = vector.load %arg6[%c0_8, %c0_9] : memref<8x128xf32, #tpu.memory_space<vmem>>, vector<8x128xf32>
    %17 = arith.addf %16, %12 : vector<8x128xf32>
    %c0_10 = arith.constant 0 : index
    %c0_11 = arith.constant 0 : index
    %18 = vector.load %arg6[%c0_10, %c0_11] : memref<8x128xf32, #tpu.memory_space<vmem>>, vector<8x128xf32>
    tpu.vector_store %arg6[%c0_10, %c0_11], %17 {strides = array<i32>} : memref<8x128xf32, #tpu.memory_space<vmem>>, vector<8x128xf32>,
    %c0_i32_12 = arith.constant 0 : i32
    %19 = arith.cmpi eq, %arg1, %c0_i32_12 : i32
    %20 = arith.extui %19 : i1 to i32
    %c0_i32_13 = arith.constant 0 : i32
    %21 = arith.cmpi ne, %20, %c0_i32_13 : i32
    scf.if %21 {
      %c0_14 = arith.constant 0 : index
      %c0_15 = arith.constant 0 : index
      %22 = vector.load %arg5[%c0_14, %c0_15] : memref<8x128xf32, #tpu.memory_space<vmem>>, vector<8x128xf32>
      %cst_16 = arith.constant dense<0.000000e+00> : vector<8xf32>
      %23 = vector.multi_reduction <add>, %22, %cst_16 [1] : vector<8x128xf32> to vector<8xf32>
      %24 = vector.shape_cast %23 : vector<8xf32> to vector<8x1xf32>
      %c0_17 = arith.constant 0 : index
      %c0_18 = arith.constant 0 : index
      %25 = vector.load %arg3[%c0_17, %c0_18] : memref<8x1xf32, #tpu.memory_space<vmem>>, vector<8x1xf32>
      tpu.vector_store %arg3[%c0_17, %c0_18], %24 {strides = array<i32>} : memref<8x1xf32, #tpu.memory_space<vmem>>, vector<8x1xf32>,
      %c0_19 = arith.constant 0 : index
      %c0_20 = arith.constant 0 : index
      %26 = vector.load %arg6[%c0_19, %c0_20] : memref<8x128xf32, #tpu.memory_space<vmem>>, vector<8x128xf32>
      %cst_21 = arith.constant dense<0.000000e+00> : vector<8xf32>
      %27 = vector.multi_reduction <add>, %26, %cst_21 [1] : vector<8x128xf32> to vector<8xf32>
      %28 = vector.shape_cast %27 : vector<8xf32> to vector<8x1xf32>
      %c0_22 = arith.constant 0 : index
      %c0_23 = arith.constant 0 : index
      %29 = vector.load %arg4[%c0_22, %c0_23] : memref<8x1xf32, #tpu.memory_space<vmem>>, vector<8x1xf32>
      tpu.vector_store %arg4[%c0_22, %c0_23], %28 {strides = array<i32>} : memref<8x1xf32, #tpu.memory_space<vmem>>, vector<8x1xf32>,
    } else {
    }
    return
  }
  func.func @transform_0(%arg0: i32, %arg1: i32) -> (i32, i32) {
    %c0_i32 = arith.constant 0 : i32
    return %arg0, %arg1 : i32, i32
  }
  func.func @transform_1(%arg0: i32, %arg1: i32) -> (i32, i32) {
    %c0_i32 = arith.constant 0 : i32
    %c0_i32_0 = arith.constant 0 : i32
    return %arg0, %c0_i32 : i32, i32
  }
  func.func @transform_2(%arg0: i32, %arg1: i32) -> (i32, i32) {
    %c0_i32 = arith.constant 0 : i32
    %c0_i32_0 = arith.constant 0 : i32
    return %arg0, %c0_i32 : i32, i32
  }
}

module attributes {stable_mosaic.version = 11 : i64} {
  func.func @_norm_kernel(%arg0: i32, %arg1: i32, %arg2: memref<8x256xf32, #tpu.memory_space<vmem>>, %arg3: memref<8x1xf32, #tpu.memory_space<vmem>>, %arg4: memref<8x1xf32, #tpu.memory_space<vmem>>, %arg5: memref<8x256xf32, #tpu.memory_space<vmem>>) attributes {dimension_semantics = [#tpu.dimension_semantics<parallel>, #tpu.dimension_semantics<parallel>], iteration_bounds = array<i64: 1, 1>, scalar_prefetch = 0 : i64, scratch_operands = 0 : i64, tpu.core_type = #tpu.core_type<tc>, window_params = [{transform_indices = @transform_0, window_bounds = array<i64: 8, 256>}, {transform_indices = @transform_1, window_bounds = array<i64: 8, 1>}, {transform_indices = @transform_2, window_bounds = array<i64: 8, 1>}, {transform_indices = @transform_3, window_bounds = array<i64: 8, 256>}]} {
    %c0 = arith.constant 0 : index
    %c0_0 = arith.constant 0 : index
    %0 = vector.load %arg2[%c0, %c0_0] : memref<8x256xf32, #tpu.memory_space<vmem>>, vector<8x256xf32>
    %c0_1 = arith.constant 0 : index
    %c0_2 = arith.constant 0 : index
    %1 = vector.load %arg3[%c0_1, %c0_2] : memref<8x1xf32, #tpu.memory_space<vmem>>, vector<8x1xf32>
    %2 = vector.broadcast %1 : vector<8x1xf32> to vector<8x256xf32>
    %3 = arith.mulf %0, %2 : vector<8x256xf32>
    %c0_3 = arith.constant 0 : index
    %c0_4 = arith.constant 0 : index
    %4 = vector.load %arg4[%c0_3, %c0_4] : memref<8x1xf32, #tpu.memory_space<vmem>>, vector<8x1xf32>
    %5 = vector.broadcast %4 : vector<8x1xf32> to vector<8x256xf32>
    %6 = arith.addf %3, %5 : vector<8x256xf32>
    %c0_5 = arith.constant 0 : index
    %c0_6 = arith.constant 0 : index
    %7 = vector.load %arg5[%c0_5, %c0_6] : memref<8x256xf32, #tpu.memory_space<vmem>>, vector<8x256xf32>
    tpu.vector_store %arg5[%c0_5, %c0_6], %6 {strides = array<i32>} : memref<8x256xf32, #tpu.memory_space<vmem>>, vector<8x256xf32>,
    return
  }
  func.func @transform_0(%arg0: i32, %arg1: i32) -> (i32, i32) {
    %c0_i32 = arith.constant 0 : i32
    return %arg0, %arg1 : i32, i32
  }
  func.func @transform_1(%arg0: i32, %arg1: i32) -> (i32, i32) {
    %c0_i32 = arith.constant 0 : i32
    %c0_i32_0 = arith.constant 0 : i32
    return %arg0, %c0_i32 : i32, i32
  }
  func.func @transform_2(%arg0: i32, %arg1: i32) -> (i32, i32) {
    %c0_i32 = arith.constant 0 : i32
    %c0_i32_0 = arith.constant 0 : i32
    return %arg0, %c0_i32 : i32, i32
  }
  func.func @transform_3(%arg0: i32, %arg1: i32) -> (i32, i32) {
    %c0_i32 = arith.constant 0 : i32
    return %arg0, %arg1 : i32, i32
  }
}

</mosaic_0001>

<llo_original>
// kernel: tile.18
$region0: #{tile.18}
  #allocation0 [shape = 's32[1]{0}', space=sflag, size = 0x4, scoped, tag = 'scoped memory for tile.18']
  %s0 = inlined_call_operand.vmem [shape: f32[4], index: 0, kind: input, shape index: {}]
  %s1 = inlined_call_operand.vmem [shape: f32[2,4], index: 1, kind: output, shape index: {}]
  // Predicated region
  $region2: #{tile.18} parent=0 // pred_check
    _
  $region3: #{tile.18} parent=0 // pred_check_branch
    %3 = sbr.rel (0) target = $region5
  $region4: #{tile.18} parent=0 // pred_region
    _
  $region5: #{tile.18} parent=0 // pred_fallthru
    _
  %v4 = vld [vmem:[%s0] ss:$0 sm:$0xff]
  %5 = vst [vmem:[%s1] sm:$0x3] %v4

// kernel: tile.0
$region0: #{tile.0}
  %s0 = inlined_call_operand.vmem [shape: f32[2,4], index: 0, kind: input, shape index: {}]
  %s1 = inlined_call_operand.vmem [shape: f32[8,1], index: 1, kind: output, shape index: {}]
  $region1: #{tile.0} parent=0
    #allocation0 [shape = 'u8[4096]{0}', space=vmem, size = 0x1000, scoped, tag = 'scoped mem for input reshape']
    %s3 = ssub.s32 4, 1
    %v4 = vld [vmem:[%s0] sm:%s3]
    %5 = vst [vmem:[#allocation0] sm:%s3] %v4
    %v6 = vld [vmem:[#allocation0] sm:$0x3]
    %vm7 = vcmask 7168
    %8 = vst.msk [vmem:[%s1] ss:$4 sm:$0x3] %vm7, %v6
    %v9 = vld [vmem:[#allocation0] sm:$0x3]
    %10 = vrot.lane.b32.xlu0 %v9, 127
    %v11 = vpop.permute.xlu0 %10
    %vm12 = vcmask 7168
    %s13 = scalar_lea.vmem %s1, 1
    %14 = vst.msk [vmem:[%s13] ss:$4 sm:$0x3] %vm12, %v11
    %v15 = vld [vmem:[#allocation0] sm:$0x3]
    %16 = vrot.lane.b32.xlu0 %v15, 126
    %v17 = vpop.permute.xlu0 %16
    %vm18 = vcmask 7168
    %s19 = scalar_lea.vmem %s1, 2
    %20 = vst.msk [vmem:[%s19] ss:$4 sm:$0x3] %vm18, %v17
    %v21 = vld [vmem:[#allocation0] sm:$0x3]
    %22 = vrot.lane.b32.xlu0 %v21, 125
    %v23 = vpop.permute.xlu0 %22
    %vm24 = vcmask 7168
    %s25 = scalar_lea.vmem %s1, 3
    %26 = vst.msk [vmem:[%s25] ss:$4 sm:$0x3] %vm24, %v23

// kernel: _batch_norm_forward_impl.3
$region0: #{_batch_norm_forward_impl.3}
  #allocation0 [shape = 'u32[]', space=smem, size = 0x4, offset = 0x4, fixed_abs, tag = 'smem constant byte address 0x4 - core index']
  #allocation1 [shape = 'u32[72,128]{1,0:T(1,128)}', space=vmem, size = 0x9000, scoped, tag = 'internal scratch']
  %s0 = inlined_call_operand.vmem [shape: f32[8,256], index: 0, kind: input, shape index: {}]
  %s1 = inlined_call_operand.vmem [shape: f32[8,1], index: 1, kind: input, shape index: {}]
  %s2 = inlined_call_operand.vmem [shape: f32[8,1], index: 2, kind: input, shape index: {}]
  %s3 = inlined_call_operand.vmem [shape: f32[8,256], index: 3, kind: output, shape index: {}]
  %s4 = sld [smem:[#allocation0]]
  $region22: #{_batch_norm_forward_impl.3} parent=0
    _
  %s6 = ssub.s32 1, %s4
  %s7 = scalar_select 0, %s6, %s4
  // Predicated region
  $region2: #{_batch_norm_forward_impl.3} parent=0 // pred_check
    _
  $region3: #{_batch_norm_forward_impl.3} parent=0 // pred_check_branch
    %9 = sbr.rel (0) target = $region5
  $region4: #{_batch_norm_forward_impl.3} parent=0 // pred_region
    _
  $region5: #{_batch_norm_forward_impl.3} parent=0 // pred_fallthru
    _
  // Predicated region
  $region6: #{_batch_norm_forward_impl.3} parent=0 // pred_check
    _
  $region7: #{_batch_norm_forward_impl.3} parent=0 // pred_check_branch
    %11 = sbr.rel (0) target = $region9
  $region8: #{_batch_norm_forward_impl.3} parent=0 // pred_region
    _
  $region9: #{_batch_norm_forward_impl.3} parent=0 // pred_fallthru
    _
  // Predicated region
  $region10: #{_batch_norm_forward_impl.3} parent=0 // pred_check
    _
  $region11: #{_batch_norm_forward_impl.3} parent=0 // pred_check_branch
    %13 = sbr.rel (0) target = $region13
  $region12: #{_batch_norm_forward_impl.3} parent=0 // pred_region
    _
  $region13: #{_batch_norm_forward_impl.3} parent=0 // pred_fallthru
    _
  %v14 = vld [vmem:[%s0] sm:$0xff]
  %v15 = vld [vmem:[%s0 + $0x8] sm:$0xff]
  %v16 = vld [vmem:[%s1] sm:$0xff]
  %18 = vset.pattern.permute.xlu0 0
  %19 = vperm.xlu0 %18, %v16
  %v20 = vpop.permute.xlu0 %19
  %v22 = vmul.f32 %v14, %v20
  %v23 = vmul.f32 %v15, %v20
  %v24 = vld [vmem:[%s2] sm:$0xff]
  %26 = vset.pattern.permute.xlu0 0
  %27 = vperm.xlu0 %26, %v24
  %v28 = vpop.permute.xlu0 %27
  %v30 = vadd.f32 %v22, %v28
  %v31 = vadd.f32 %v23, %v28
  %32 = vst [vmem:[%s3] sm:$0xff] %v30
  %33 = vst [vmem:[%s3 + $0x8] sm:$0xff] %v31
  // Predicated region
  $region14: #{_batch_norm_forward_impl.3} parent=0 // pred_check
    _
  $region15: #{_batch_norm_forward_impl.3} parent=0 // pred_check_branch
    %35 = sbr.rel (0) target = $region17
  $region16: #{_batch_norm_forward_impl.3} parent=0 // pred_region
    _
  $region17: #{_batch_norm_forward_impl.3} parent=0 // pred_fallthru
    _
  // Predicated region
  $region18: #{_batch_norm_forward_impl.3} parent=0 // pred_check
    _
  $region19: #{_batch_norm_forward_impl.3} parent=0 // pred_check_branch
    %37 = sbr.rel (0) target = $region21
  $region20: #{_batch_norm_forward_impl.3} parent=0 // pred_region
    _
  $region21: #{_batch_norm_forward_impl.3} parent=0 // pred_fallthru
    _

// kernel: _batch_norm_forward_impl.2
$region0: #{_batch_norm_forward_impl.2}
  #allocation0 [shape = 'u32[]', space=smem, size = 0x4, offset = 0x4, fixed_abs, tag = 'smem constant byte address 0x4 - core index']
  #allocation1 [shape = 'u32[72,128]{1,0:T(1,128)}', space=vmem, size = 0x9000, scoped, tag = 'internal scratch']
  #allocation2 [shape = 'f32[8,128]{1,0:T(8,128)}', space=vmem, size = 0x1000, scoped, tag = 'scratch operand']
  #allocation3 [shape = 'f32[8,128]{1,0:T(8,128)}', space=vmem, size = 0x1000, scoped, tag = 'scratch operand']
  %s0 = inlined_call_operand.vmem [shape: f32[8,256], index: 0, kind: input, shape index: {}]
  %s1 = inlined_call_operand.vmem [shape: f32[8,1], index: 1, kind: output, shape index: {0}]
  %s2 = inlined_call_operand.vmem [shape: f32[8,1], index: 2, kind: output, shape index: {1}]
  %3 = xla_tuple %s1, %s2
  %s4 = sld [smem:[#allocation0]]
  $region30: #{_batch_norm_forward_impl.2} parent=0
    _
  %s6 = ssub.s32 1, %s4
  %s7 = scalar_select 0, %s6, %s4
  // Predicated region
  $region2: #{_batch_norm_forward_impl.2} parent=0 // pred_check
    _
  $region3: #{_batch_norm_forward_impl.2} parent=0 // pred_check_branch
    %9 = sbr.rel (0) target = $region5
  $region4: #{_batch_norm_forward_impl.2} parent=0 // pred_region
    _
  $region5: #{_batch_norm_forward_impl.2} parent=0 // pred_fallthru
    _
  %p10 = scmp.eq.s32.totalorder 0, 0
  // Predicated region
  $region6: #{_batch_norm_forward_impl.2} parent=0 // pred_check
    %p11 = pneg %p10
  $region7: #{_batch_norm_forward_impl.2} parent=0 // pred_check_branch
    %13 = sbr.rel (%p11) target = $region9
  $region8: #{_batch_norm_forward_impl.2} parent=0 // pred_region
    %14 = vst [vmem:[#allocation2] sm:$0xff] 0.0
    %15 = vst [vmem:[#allocation3] sm:$0xff] 0.0
  $region9: #{_batch_norm_forward_impl.2} parent=0 // pred_fallthru
    _
  %v16 = vld [vmem:[%s0] sm:$0xff]
  %v17 = vadd.f32 %v16, 0.0
  %v18 = vmul.f32 %v16, %v16
  %v19 = vadd.f32 %v18, 0.0
  %v20 = vld [vmem:[%s0 + $0x8] sm:$0xff]
  %v21 = vadd.f32 %v17, %v20
  %v22 = vmul.f32 %v20, %v20
  %v23 = vadd.f32 %v19, %v22
  %v24 = vld [vmem:[#allocation2] sm:$0xff]
  %v25 = vadd.f32 %v24, %v21
  %26 = vst [vmem:[#allocation2] sm:$0xff] %v25
  %v27 = vld [vmem:[#allocation3] sm:$0xff]
  %v28 = vadd.f32 %v27, %v23
  %29 = vst [vmem:[#allocation3] sm:$0xff] %v28
  // Predicated region
  $region10: #{_batch_norm_forward_impl.2} parent=0 // pred_check
    %p30 = pneg %p10
  $region11: #{_batch_norm_forward_impl.2} parent=0 // pred_check_branch
    %32 = sbr.rel (%p30) target = $region13
  $region12: #{_batch_norm_forward_impl.2} parent=0 // pred_region
    %v33 = vld [vmem:[#allocation2] sm:$0xff]
    %34 = vadd.xlane.f32.xlu0 %v33
    %v35 = vpop.xlane.xlu0 %34
    %vm36 = vcmask 7168
    %37 = vst.msk [vmem:[%s1] sm:$0xff] %vm36, %v35
    %v38 = vld [vmem:[#allocation3] sm:$0xff]
    %39 = vadd.xlane.f32.xlu0 %v38
    %v40 = vpop.xlane.xlu0 %39
    %41 = vst.msk [vmem:[%s2] sm:$0xff] %vm36, %v40
  $region13: #{_batch_norm_forward_impl.2} parent=0 // pred_fallthru
    _
  // Predicated region
  $region14: #{_batch_norm_forward_impl.2} parent=0 // pred_check
    _
  $region15: #{_batch_norm_forward_impl.2} parent=0 // pred_check_branch
    %43 = sbr.rel (0) target = $region17
  $region16: #{_batch_norm_forward_impl.2} parent=0 // pred_region
    _
  $region17: #{_batch_norm_forward_impl.2} parent=0 // pred_fallthru
    _
  // Predicated region
  $region18: #{_batch_norm_forward_impl.2} parent=0 // pred_check
    _
  $region19: #{_batch_norm_forward_impl.2} parent=0 // pred_check_branch
    %45 = sbr.rel (0) target = $region21
  $region20: #{_batch_norm_forward_impl.2} parent=0 // pred_region
    _
  $region21: #{_batch_norm_forward_impl.2} parent=0 // pred_fallthru
    _
  // Predicated region
  $region22: #{_batch_norm_forward_impl.2} parent=0 // pred_check
    _
  $region23: #{_batch_norm_forward_impl.2} parent=0 // pred_check_branch
    %47 = sbr.rel (0) target = $region25
  $region24: #{_batch_norm_forward_impl.2} parent=0 // pred_region
    _
  $region25: #{_batch_norm_forward_impl.2} parent=0 // pred_fallthru
    _
  // Predicated region
  $region26: #{_batch_norm_forward_impl.2} parent=0 // pred_check
    _
  $region27: #{_batch_norm_forward_impl.2} parent=0 // pred_check_branch
    %49 = sbr.rel (0) target = $region29
  $region28: #{_batch_norm_forward_impl.2} parent=0 // pred_region
    _
  $region29: #{_batch_norm_forward_impl.2} parent=0 // pred_fallthru
    _

</llo_original>
